<compile_context>
chip_gen: v5e
topology: v5e:2x2
jax: 0.10.0
libtpu: 0.0.40
codegen_flags: <defaults>
</compile_context>

<pallas_src>
import jax
import jax.numpy as jnp
from jax import lax
from jax.experimental import pallas as pl
from jax.experimental.pallas import tpu as pltpu

_EPS = 1e-5


def _projection_mlp_kernel(
    x_ref,      # (B, IN)        bf16, VMEM-resident (single buffer)
    w1_ref,     # (IN, TH)       bf16, streamed hidden tile (double buffered)
    w2_ref,     # (TH, H)        bf16, streamed hidden-tile rows (double buffered)
    bn_ref,     # (4, H)         f32 rows: [gamma1, beta1, gamma2, beta2], resident
    w3_ref,     # (H, OUT)       bf16, resident (single buffer)
    b3_ref,     # (1, OUT)       f32, resident
    o_ref,      # (B, OUT)       f32
    acc_ref,    # (B, H)         f32 scratch: layer-2 pre-BN accumulator
):
    j = pl.program_id(0)
    nj = pl.num_programs(0)
    batch = x_ref.shape[0]
    th = w1_ref.shape[1]
    inv_b = 1.0 / batch

    @pl.when(j == 0)
    def _init():
        acc_ref[...] = jnp.zeros_like(acc_ref)

    # ---- Layer 1 (this hidden tile): Linear -> BN(batch stats) -> ReLU -----
    # Linear bias is omitted: it cancels exactly under the following BN.
    h1 = jnp.dot(x_ref[...], w1_ref[...], preferred_element_type=jnp.float32)
    mu = jnp.sum(h1, axis=0, keepdims=True) * inv_b
    var = jnp.maximum(
        jnp.sum(h1 * h1, axis=0, keepdims=True) * inv_b - mu * mu, 0.0)

    col = pl.multiple_of(j * th, 128)            # 128-aligned lane offset
    bn1 = bn_ref[:, pl.ds(col, th)]              # (4, TH): rows 0/1 are g1/beta1
    scale = bn1[0:1, :] * lax.rsqrt(var + _EPS)  # folded BN affine
    shift = bn1[1:2, :] - mu * scale
    h1 = jnp.maximum(h1 * scale + shift, 0.0)

    # ---- Layer 2: partial contraction over this hidden tile ----------------
    # Keep as a single fused statement (MRB in-place accumulate on v7x).
    acc_ref[...] += jnp.dot(h1.astype(w2_ref.dtype), w2_ref[...],
                            preferred_element_type=jnp.float32)

    # ---- Finalize on last tile: BN2 -> ReLU -> Layer 3 ----------------------
    @pl.when(j == nj - 1)
    def _finalize():
        h2 = acc_ref[...]                        # bias b2 also cancels under BN
        mu2 = jnp.sum(h2, axis=0, keepdims=True) * inv_b
        var2 = jnp.maximum(
            jnp.sum(h2 * h2, axis=0, keepdims=True) * inv_b - mu2 * mu2, 0.0)
        scale2 = bn_ref[2:3, :] * lax.rsqrt(var2 + _EPS)
        shift2 = bn_ref[3:4, :] - mu2 * scale2
        h2 = jnp.maximum(h2 * scale2 + shift2, 0.0)
        out = jnp.dot(h2.astype(w3_ref.dtype), w3_ref[...],
                      preferred_element_type=jnp.float32) + b3_ref[...]
        o_ref[...] = out.astype(o_ref.dtype)


def projection_mlp(x, params, *, hidden_tile=512, out_dtype=jnp.float32):
    """Fused ProjectionMLP forward (training-mode BN). Streams W1/W2 hidden tiles."""
    B, in_dim = x.shape
    hidden_dim = params["w1"].shape[1]
    out_dim = params["w3"].shape[1]

    th = min(hidden_tile, hidden_dim)
    assert hidden_dim % th == 0, "hidden_dim must be a multiple of hidden_tile"
    assert th % 128 == 0 and out_dim % 128 == 0 and in_dim % 128 == 0, \
        "feature dims must be multiples of 128 for MXU/lane alignment"
    assert B % 8 == 0, "batch must be a multiple of 8 (sublane alignment)"
    n_tiles = hidden_dim // th

    x_bf = x.astype(jnp.bfloat16)
    w1 = params["w1"].astype(jnp.bfloat16)
    w2 = params["w2"].astype(jnp.bfloat16)
    w3 = params["w3"].astype(jnp.bfloat16)
    # b1/b2 intentionally NOT passed: they cancel under training-mode BN.
    bn = jnp.stack(
        [params["g1"], params["beta1"], params["g2"], params["beta2"]],
        axis=0).astype(jnp.float32)                       # (4, hidden)
    b3 = params["b3"].reshape(1, out_dim).astype(jnp.float32)

    # --- VMEM budget (bytes), computed from actual buffer footprint ---------
    bf16_b, f32_b = 2, 4
    vmem_need = (
        B * in_dim * bf16_b                # x (single buffer)
        + 2 * in_dim * th * bf16_b         # W1 tile (double buffered)
        + 2 * th * hidden_dim * bf16_b     # W2 tile (double buffered)
        + 8 * hidden_dim * f32_b           # packed BN params (sublane-padded)
        + hidden_dim * out_dim * bf16_b    # W3 (single buffer)
        + 8 * out_dim * f32_b              # b3 (sublane-padded)
        + 2 * B * out_dim * f32_b          # output (default double buffer)
        + B * hidden_dim * f32_b           # f32 accumulator scratch
    )
    vmem_limit = int(min(max(vmem_need + (8 << 20), 16 << 20), 96 << 20))

    flops = 2 * B * (in_dim * hidden_dim + hidden_dim * hidden_dim
                     + hidden_dim * out_dim)
    bytes_accessed = (x_bf.size * 2 + w1.size * 2 + w2.size * 2 + w3.size * 2
                      + bn.size * 4 + b3.size * 4
                      + B * out_dim * jnp.dtype(out_dtype).itemsize)

    resident = pl.Buffered(1)   # grid-invariant operands: fetch once, one buffer

    grid_spec = pltpu.PrefetchScalarGridSpec(
        num_scalar_prefetch=0,
        grid=(n_tiles,),
        in_specs=[
            pl.BlockSpec((B, in_dim), lambda j: (0, 0),
                         pipeline_mode=resident),               # x (resident)
            pl.BlockSpec((in_dim, th), lambda j: (0, j)),        # W1 column tile
            pl.BlockSpec((th, hidden_dim), lambda j: (j, 0)),    # W2 row tile
            pl.BlockSpec((4, hidden_dim), lambda j: (0, 0),
                         pipeline_mode=resident),                # BN gamma/beta
            pl.BlockSpec((hidden_dim, out_dim), lambda j: (0, 0),
                         pipeline_mode=resident),                # W3 (resident)
            pl.BlockSpec((1, out_dim), lambda j: (0, 0),
                         pipeline_mode=resident),                # b3
        ],
        out_specs=pl.BlockSpec((B, out_dim), lambda j: (0, 0)),
        scratch_shapes=[pltpu.VMEM((B, hidden_dim), jnp.float32)],
    )

    return pl.pallas_call(
        _projection_mlp_kernel,
        out_shape=jax.ShapeDtypeStruct((B, out_dim), out_dtype),
        grid_spec=grid_spec,
        compiler_params=pltpu.CompilerParams(
            dimension_semantics=("arbitrary",),   # reduction over hidden tiles
            vmem_limit_bytes=vmem_limit,
        ),
        cost_estimate=pl.CostEstimate(
            flops=flops, transcendentals=2 * hidden_dim,
            bytes_accessed=bytes_accessed),
    )(x_bf, w1, w2, bn, w3, b3)


def init_params(key, in_dim, hidden_dim, out_dim):
    """PyTorch-like Linear init (f32).  BN gamma/beta randomized away from the
    PyTorch defaults (ones/zeros) so the test exercises the affine path."""
    ks = jax.random.split(key, 10)

    def linear(kw, kb, fan_in, fan_out):
        bound = 1.0 / (fan_in ** 0.5)
        w = jax.random.uniform(kw, (fan_in, fan_out), jnp.float32, -bound, bound)
        b = jax.random.uniform(kb, (fan_out,), jnp.float32, -bound, bound)
        return w, b

    w1, b1 = linear(ks[0], ks[1], in_dim, hidden_dim)
    w2, b2 = linear(ks[2], ks[3], hidden_dim, hidden_dim)
    w3, b3 = linear(ks[4], ks[5], hidden_dim, out_dim)
    g1 = jax.random.uniform(ks[6], (hidden_dim,), jnp.float32, 0.5, 1.5)
    be1 = jax.random.uniform(ks[7], (hidden_dim,), jnp.float32, -0.5, 0.5)
    g2 = jax.random.uniform(ks[8], (hidden_dim,), jnp.float32, 0.5, 1.5)
    be2 = jax.random.uniform(ks[9], (hidden_dim,), jnp.float32, -0.5, 0.5)
    return dict(w1=w1, b1=b1, g1=g1, beta1=be1,
                w2=w2, b2=b2, g2=g2, beta2=be2,
                w3=w3, b3=b3)


def _reference(x, params):
    """Pure-JAX reference of the PyTorch module (training-mode BN, biases
    included, two-pass variance).  Matmul inputs mirror the kernel's bf16."""

    def bn(h, g, b):
        mu = jnp.mean(h, axis=0, keepdims=True)
        var = jnp.mean((h - mu) ** 2, axis=0, keepdims=True)   # biased, as PyTorch fwd
        return g * (h - mu) * lax.rsqrt(var + _EPS) + b

    h = jnp.dot(x.astype(jnp.bfloat16), params["w1"].astype(jnp.bfloat16),
                preferred_element_type=jnp.float32) + params["b1"]
    h = jnp.maximum(bn(h, params["g1"], params["beta1"]), 0.0)
    h = jnp.dot(h.astype(jnp.bfloat16), params["w2"].astype(jnp.bfloat16),
                preferred_element_type=jnp.float32) + params["b2"]
    h = jnp.maximum(bn(h, params["g2"], params["beta2"]), 0.0)
    return jnp.dot(h.astype(jnp.bfloat16), params["w3"].astype(jnp.bfloat16),
                   preferred_element_type=jnp.float32) + params["b3"]


if __name__ == "__main__":
    # Small but MXU/lane-aligned shapes (batch mult of 8, features mult of 128);
    # module defaults (2048/256) shrunk for the test.  TH=128 -> 2 grid steps,
    # exercising the streaming + accumulator finalize path.
    B, IN_DIM, HIDDEN_DIM, OUT_DIM = 64, 128, 256, 128
    TH = 128

    key = jax.random.PRNGKey(0)
    kx, kp = jax.random.split(key)
    x = jax.random.normal(kx, (B, IN_DIM), jnp.float32)
    params = init_params(kp, IN_DIM, HIDDEN_DIM, OUT_DIM)

    out = jax.block_until_ready(projection_mlp(x, params, hidden_tile=TH))

    ref = _reference(x, params)
    assert out.shape == (B, OUT_DIM)
    err = float(jnp.max(jnp.abs(out - ref)))
    assert jnp.allclose(out, ref, atol=1e-2, rtol=1e-2), f"max |err| = {err}"

    print("KERNEL_OK")
</pallas_src>

<mosaic_0001>
module attributes {stable_mosaic.version = 11 : i64} {
  func.func @_projection_mlp_kernel(%arg0: i32, %arg1: memref<64x128xbf16, #tpu.memory_space<vmem>>, %arg2: memref<128x128xbf16, #tpu.memory_space<vmem>>, %arg3: memref<128x256xbf16, #tpu.memory_space<vmem>>, %arg4: memref<4x256xf32, #tpu.memory_space<vmem>>, %arg5: memref<256x128xbf16, #tpu.memory_space<vmem>>, %arg6: memref<1x128xf32, #tpu.memory_space<vmem>>, %arg7: memref<64x128xf32, #tpu.memory_space<vmem>>, %arg8: memref<64x256xf32, #tpu.memory_space<vmem>>) attributes {dimension_semantics = [#tpu.dimension_semantics<arbitrary>], iteration_bounds = array<i64: 2>, scalar_prefetch = 0 : i64, scratch_operands = 1 : i64, tpu.core_type = #tpu.core_type<tc>, window_params = [{pipeline_mode = #tpu.pipeline_mode<synchronous>, transform_indices = @transform_0, window_bounds = array<i64: 64, 128>}, {transform_indices = @transform_1, window_bounds = array<i64: 128, 128>}, {transform_indices = @transform_2, window_bounds = array<i64: 128, 256>}, {pipeline_mode = #tpu.pipeline_mode<synchronous>, transform_indices = @transform_3, window_bounds = array<i64: 4, 256>}, {pipeline_mode = #tpu.pipeline_mode<synchronous>, transform_indices = @transform_4, window_bounds = array<i64: 256, 128>}, {pipeline_mode = #tpu.pipeline_mode<synchronous>, transform_indices = @transform_5, window_bounds = array<i64: 1, 128>}, {pipeline_mode = #tpu.pipeline_mode<synchronous>, transform_indices = @transform_6, window_bounds = array<i64: 64, 128>}]} {
    %c0_i32 = arith.constant 0 : i32
    %0 = arith.cmpi eq, %arg0, %c0_i32 : i32
    %1 = arith.extui %0 : i1 to i32
    %c0_i32_0 = arith.constant 0 : i32
    %2 = arith.cmpi ne, %1, %c0_i32_0 : i32
    scf.if %2 {
      %cst_20 = arith.constant 0.000000e+00 : f32
      %46 = vector.broadcast %cst_20 : f32 to vector<64x256xf32>
      %c0_21 = arith.constant 0 : index
      %c0_22 = arith.constant 0 : index
      %47 = vector.load %arg8[%c0_21, %c0_22] : memref<64x256xf32, #tpu.memory_space<vmem>>, vector<64x256xf32>
      tpu.vector_store %arg8[%c0_21, %c0_22], %46 {strides = array<i32>} : memref<64x256xf32, #tpu.memory_space<vmem>>, vector<64x256xf32>,
    } else {
    }
    %c0 = arith.constant 0 : index
    %c0_1 = arith.constant 0 : index
    %3 = vector.load %arg1[%c0, %c0_1] : memref<64x128xbf16, #tpu.memory_space<vmem>>, vector<64x128xbf16>
    %c0_2 = arith.constant 0 : index
    %c0_3 = arith.constant 0 : index
    %4 = vector.load %arg2[%c0_2, %c0_3] : memref<128x128xbf16, #tpu.memory_space<vmem>>, vector<128x128xbf16>
    %cst = arith.constant dense<0.000000e+00> : vector<64x128xf32>
    %5 = tpu.matmul %3, %4, %cst {dimension_numbers = #tpu.dot_dimension_numbers<[1], [0], [0], [1], [0, 0, 1, 1], [], []>} : vector<64x128xbf16>, vector<128x128xbf16>, vector<64x128xf32> -> vector<64x128xf32>
    %cst_4 = arith.constant dense<0.000000e+00> : vector<128xf32>
    %6 = vector.multi_reduction <add>, %5, %cst_4 [0] : vector<64x128xf32> to vector<128xf32>
    %7 = vector.shape_cast %6 : vector<128xf32> to vector<1x128xf32>
    %cst_5 = arith.constant 1.562500e-02 : f32
    %8 = vector.broadcast %cst_5 : f32 to vector<1x128xf32>
    %9 = arith.mulf %7, %8 : vector<1x128xf32>
    %10 = arith.mulf %5, %5 : vector<64x128xf32>
    %cst_6 = arith.constant dense<0.000000e+00> : vector<128xf32>
    %11 = vector.multi_reduction <add>, %10, %cst_6 [0] : vector<64x128xf32> to vector<128xf32>
    %12 = vector.shape_cast %11 : vector<128xf32> to vector<1x128xf32>
    %cst_7 = arith.constant 1.562500e-02 : f32
    %13 = vector.broadcast %cst_7 : f32 to vector<1x128xf32>
    %14 = arith.mulf %12, %13 : vector<1x128xf32>
    %15 = arith.mulf %9, %9 : vector<1x128xf32>
    %16 = arith.subf %14, %15 : vector<1x128xf32>
    %cst_8 = arith.constant 0.000000e+00 : f32
    %17 = vector.broadcast %cst_8 : f32 to vector<1x128xf32>
    %18 = arith.maximumf %16, %17 : vector<1x128xf32>
    %c128_i32 = arith.constant 128 : i32
    %19 = arith.muli %arg0, %c128_i32 : i32
    %20 = tpu.assume_multiple %19, 128 : i32
    %c0_9 = arith.constant 0 : index
    %21 = arith.index_cast %20 : i32 to index
    %22 = vector.load %arg4[%c0_9, %21] : memref<4x256xf32, #tpu.memory_space<vmem>>, vector<4x128xf32>
    %23 = vector.extract_strided_slice %22 {offsets = [0, 0], sizes = [1, 128], strides = [1, 1]} : vector<4x128xf32> to vector<1x128xf32>
    %cst_10 = arith.constant 9.99999974E-6 : f32
    %24 = vector.broadcast %cst_10 : f32 to vector<1x128xf32>
    %25 = arith.addf %18, %24 : vector<1x128xf32>
    %26 = math.rsqrt %25 : vector<1x128xf32>
    %27 = arith.mulf %23, %26 : vector<1x128xf32>
    %28 = vector.extract_strided_slice %22 {offsets = [1, 0], sizes = [1, 128], strides = [1, 1]} : vector<4x128xf32> to vector<1x128xf32>
    %29 = arith.mulf %9, %27 : vector<1x128xf32>
    %30 = arith.subf %28, %29 : vector<1x128xf32>
    %31 = vector.broadcast %27 : vector<1x128xf32> to vector<64x128xf32>
    %32 = arith.mulf %5, %31 : vector<64x128xf32>
    %33 = vector.broadcast %30 : vector<1x128xf32> to vector<64x128xf32>
    %34 = arith.addf %32, %33 : vector<64x128xf32>
    %cst_11 = arith.constant 0.000000e+00 : f32
    %35 = vector.broadcast %cst_11 : f32 to vector<64x128xf32>
    %36 = arith.maximumf %34, %35 : vector<64x128xf32>
    %c0_12 = arith.constant 0 : index
    %c0_13 = arith.constant 0 : index
    %37 = vector.load %arg8[%c0_12, %c0_13] : memref<64x256xf32, #tpu.memory_space<vmem>>, vector<64x256xf32>
    %38 = arith.truncf %36 : vector<64x128xf32> to vector<64x128xbf16>
    %c0_14 = arith.constant 0 : index
    %c0_15 = arith.constant 0 : index
    %39 = vector.load %arg3[%c0_14, %c0_15] : memref<128x256xbf16, #tpu.memory_space<vmem>>, vector<128x256xbf16>
    %cst_16 = arith.constant dense<0.000000e+00> : vector<64x256xf32>
    %40 = tpu.matmul %38, %39, %cst_16 {dimension_numbers = #tpu.dot_dimension_numbers<[1], [0], [0], [1], [0, 0, 1, 1], [], []>} : vector<64x128xbf16>, vector<128x256xbf16>, vector<64x256xf32> -> vector<64x256xf32>
    %41 = arith.addf %37, %40 : vector<64x256xf32>
    %c0_17 = arith.constant 0 : index
    %c0_18 = arith.constant 0 : index
    %42 = vector.load %arg8[%c0_17, %c0_18] : memref<64x256xf32, #tpu.memory_space<vmem>>, vector<64x256xf32>
    tpu.vector_store %arg8[%c0_17, %c0_18], %41 {strides = array<i32>} : memref<64x256xf32, #tpu.memory_space<vmem>>, vector<64x256xf32>,
    %c1_i32 = arith.constant 1 : i32
    %43 = arith.cmpi eq, %arg0, %c1_i32 : i32
    %44 = arith.extui %43 : i1 to i32
    %c0_i32_19 = arith.constant 0 : i32
    %45 = arith.cmpi ne, %44, %c0_i32_19 : i32
    scf.if %45 {
      %c0_20 = arith.constant 0 : index
      %c0_21 = arith.constant 0 : index
      %46 = vector.load %arg8[%c0_20, %c0_21] : memref<64x256xf32, #tpu.memory_space<vmem>>, vector<64x256xf32>
      %cst_22 = arith.constant dense<0.000000e+00> : vector<256xf32>
      %47 = vector.multi_reduction <add>, %46, %cst_22 [0] : vector<64x256xf32> to vector<256xf32>
      %48 = vector.shape_cast %47 : vector<256xf32> to vector<1x256xf32>
      %cst_23 = arith.constant 1.562500e-02 : f32
      %49 = vector.broadcast %cst_23 : f32 to vector<1x256xf32>
      %50 = arith.mulf %48, %49 : vector<1x256xf32>
      %51 = arith.mulf %46, %46 : vector<64x256xf32>
      %cst_24 = arith.constant dense<0.000000e+00> : vector<256xf32>
      %52 = vector.multi_reduction <add>, %51, %cst_24 [0] : vector<64x256xf32> to vector<256xf32>
      %53 = vector.shape_cast %52 : vector<256xf32> to vector<1x256xf32>
      %cst_25 = arith.constant 1.562500e-02 : f32
      %54 = vector.broadcast %cst_25 : f32 to vector<1x256xf32>
      %55 = arith.mulf %53, %54 : vector<1x256xf32>
      %56 = arith.mulf %50, %50 : vector<1x256xf32>
      %57 = arith.subf %55, %56 : vector<1x256xf32>
      %cst_26 = arith.constant 0.000000e+00 : f32
      %58 = vector.broadcast %cst_26 : f32 to vector<1x256xf32>
      %59 = arith.maximumf %57, %58 : vector<1x256xf32>
      %c2 = arith.constant 2 : index
      %c0_27 = arith.constant 0 : index
      %60 = vector.load %arg4[%c2, %c0_27] : memref<4x256xf32, #tpu.memory_space<vmem>>, vector<1x256xf32>
      %cst_28 = arith.constant 9.99999974E-6 : f32
      %61 = vector.broadcast %cst_28 : f32 to vector<1x256xf32>
      %62 = arith.addf %59, %61 : vector<1x256xf32>
      %63 = math.rsqrt %62 : vector<1x256xf32>
      %64 = arith.mulf %60, %63 : vector<1x256xf32>
      %c3 = arith.constant 3 : index
      %c0_29 = arith.constant 0 : index
      %65 = vector.load %arg4[%c3, %c0_29] : memref<4x256xf32, #tpu.memory_space<vmem>>, vector<1x256xf32>
      %66 = arith.mulf %50, %64 : vector<1x256xf32>
      %67 = arith.subf %65, %66 : vector<1x256xf32>
      %68 = vector.broadcast %64 : vector<1x256xf32> to vector<64x256xf32>
      %69 = arith.mulf %46, %68 : vector<64x256xf32>
      %70 = vector.broadcast %67 : vector<1x256xf32> to vector<64x256xf32>
      %71 = arith.addf %69, %70 : vector<64x256xf32>
      %cst_30 = arith.constant 0.000000e+00 : f32
      %72 = vector.broadcast %cst_30 : f32 to vector<64x256xf32>
      %73 = arith.maximumf %71, %72 : vector<64x256xf32>
      %74 = arith.truncf %73 : vector<64x256xf32> to vector<64x256xbf16>
      %c0_31 = arith.constant 0 : index
      %c0_32 = arith.constant 0 : index
      %75 = vector.load %arg5[%c0_31, %c0_32] : memref<256x128xbf16, #tpu.memory_space<vmem>>, vector<256x128xbf16>
      %cst_33 = arith.constant dense<0.000000e+00> : vector<64x128xf32>
      %76 = tpu.matmul %74, %75, %cst_33 {dimension_numbers = #tpu.dot_dimension_numbers<[1], [0], [0], [1], [0, 0, 1, 1], [], []>} : vector<64x256xbf16>, vector<256x128xbf16>, vector<64x128xf32> -> vector<64x128xf32>
      %c0_34 = arith.constant 0 : index
      %c0_35 = arith.constant 0 : index
      %77 = vector.load %arg6[%c0_34, %c0_35] : memref<1x128xf32, #tpu.memory_space<vmem>>, vector<1x128xf32>
      %78 = vector.broadcast %77 : vector<1x128xf32> to vector<64x128xf32>
      %79 = arith.addf %76, %78 : vector<64x128xf32>
      %c0_36 = arith.constant 0 : index
      %c0_37 = arith.constant 0 : index
      %80 = vector.load %arg7[%c0_36, %c0_37] : memref<64x128xf32, #tpu.memory_space<vmem>>, vector<64x128xf32>
      tpu.vector_store %arg7[%c0_36, %c0_37], %79 {strides = array<i32>} : memref<64x128xf32, #tpu.memory_space<vmem>>, vector<64x128xf32>,
    } else {
    }
    return
  }
  func.func @transform_0(%arg0: i32) -> (i32, i32) {
    %c0_i32 = arith.constant 0 : i32
    %c0_i32_0 = arith.constant 0 : i32
    %c0_i32_1 = arith.constant 0 : i32
    return %c0_i32, %c0_i32_0 : i32, i32
  }
  func.func @transform_1(%arg0: i32) -> (i32, i32) {
    %c0_i32 = arith.constant 0 : i32
    %c0_i32_0 = arith.constant 0 : i32
    return %c0_i32, %arg0 : i32, i32
  }
  func.func @transform_2(%arg0: i32) -> (i32, i32) {
    %c0_i32 = arith.constant 0 : i32
    %c0_i32_0 = arith.constant 0 : i32
    return %arg0, %c0_i32 : i32, i32
  }
  func.func @transform_3(%arg0: i32) -> (i32, i32) {
    %c0_i32 = arith.constant 0 : i32
    %c0_i32_0 = arith.constant 0 : i32
    %c0_i32_1 = arith.constant 0 : i32
    return %c0_i32, %c0_i32_0 : i32, i32
  }
  func.func @transform_4(%arg0: i32) -> (i32, i32) {
    %c0_i32 = arith.constant 0 : i32
    %c0_i32_0 = arith.constant 0 : i32
    %c0_i32_1 = arith.constant 0 : i32
    return %c0_i32, %c0_i32_0 : i32, i32
  }
  func.func @transform_5(%arg0: i32) -> (i32, i32) {
    %c0_i32 = arith.constant 0 : i32
    %c0_i32_0 = arith.constant 0 : i32
    %c0_i32_1 = arith.constant 0 : i32
    return %c0_i32, %c0_i32_0 : i32, i32
  }
  func.func @transform_6(%arg0: i32) -> (i32, i32) {
    %c0_i32 = arith.constant 0 : i32
    %c0_i32_0 = arith.constant 0 : i32
    %c0_i32_1 = arith.constant 0 : i32
    return %c0_i32, %c0_i32_0 : i32, i32
  }
}

</mosaic_0001>

<llo_original>
// kernel: tpu_custom_call.1
$region0: #{tpu_custom_call.1}
  #allocation0 [shape = 'u32[]', space=smem, size = 0x4, offset = 0x4, fixed_abs, tag = 'smem constant byte address 0x4 - core index']
  #allocation1 [shape = 'u32[72,128]{1,0:T(1,128)}', space=vmem, size = 0x9000, scoped, tag = 'internal scratch']
  #allocation2 [shape = 'f32[64,256]{1,0:T(8,128)}', space=vmem, size = 0x10000, scoped, tag = 'scratch operand']
  %s0 = inlined_call_operand.hbm [shape: bf16[64,128], index: 0, kind: input, shape index: {}]
  %s1 = inlined_call_operand.hbm [shape: bf16[128,256], index: 1, kind: input, shape index: {}]
  %s2 = inlined_call_operand.hbm [shape: bf16[256,256], index: 2, kind: input, shape index: {}]
  %s3 = inlined_call_operand.hbm [shape: f32[4,256], index: 3, kind: input, shape index: {}]
  %s4 = inlined_call_operand.hbm [shape: bf16[256,128], index: 4, kind: input, shape index: {}]
  %s5 = inlined_call_operand.vmem [shape: f32[1,128], index: 5, kind: input, shape index: {}]
  %s6 = inlined_call_operand.hbm [shape: f32[64,128], index: 6, kind: output, shape index: {}]
  %s7 = sld [smem:[#allocation0]]
  $region85: #{tpu_custom_call.1} parent=0
    _
  %s9 = ssub.s32 1, %s7
  %s10 = scalar_select 0, %s9, %s7
  $region1: #{tpu_custom_call.1} parent=0
    #allocation3 [shape = 'u8[16384]{0}', space=vmem, size = 0x4000, scoped, tag = 'input window, operand 0, single buffered']
    #allocation4 [shape = 's32[2]{0}', space=sflag, size = 0x8, scoped, tag = 'scoped memory for tpu_custom_call.1']
    #allocation5 [shape = 's32[2]{0}', space=sflag, size = 0x8, scoped, tag = 'scoped memory for tpu_custom_call.1']
    #allocation6 [shape = 'u8[65536]{0}', space=vmem, size = 0x10000, scoped, tag = 'input window, operand 1']
    #allocation7 [shape = 's32[2]{0}', space=sflag, size = 0x8, scoped, tag = 'scoped memory for tpu_custom_call.1']
    #allocation8 [shape = 'u8[131072]{0}', space=vmem, size = 0x20000, scoped, tag = 'input window, operand 2']
    #allocation9 [shape = 'u8[4096]{0}', space=vmem, size = 0x1000, scoped, tag = 'input window, operand 3, single buffered']
    #allocation10 [shape = 's32[1]{0}', space=sflag, size = 0x4, scoped, tag = 'scoped memory for tpu_custom_call.1']
    #allocation11 [shape = 'u8[65536]{0}', space=vmem, size = 0x10000, scoped, tag = 'input window, operand 4, single buffered']
    #allocation12 [shape = 'u8[32768]{0}', space=vmem, size = 0x8000, scoped, tag = 'output window, operand 0, single buffered']
    %11 = vsyncpa [#allocation4], 0
    %12 = vsyncpa [#allocation7], 0
    %s13 = scalar_lea.sflag [#allocation7], 1
    %14 = vsyncpa %s13, 0
    %15 = vsyncpa [#allocation10], 0
    %16 = vsyncpa [#allocation5], 0
    loop: start=0, step=1, limit=4
    $region2: #{tpu_custom_call.1} parent=1 // loop_pre_header
      _
    $region3: #{tpu_custom_call.1} parent=1 // loop_header
      %s18 = sphi 0, %s22
      %p19 = scmp.ge.s32.totalorder %s18, 4
      %s26 = sphi 0, %s26
      %s28 = sphi 0, %s26
      %s29 = sphi 0, %s28
      %s43 = sphi 0, %s29
      %s49 = sphi 0, %s51
      %s52 = sphi 0, %s49
      %s53 = sphi 0, %s52
      %s69 = sphi 0, %s53
      %s75 = sphi 0, %s77
      %s78 = sphi 0, %s75
      %s79 = sphi 0, %s78
      %s95 = sphi 0, %s79
      %s99 = sphi 0, %s99
      %s101 = sphi 0, %s99
      %s102 = sphi 0, %s101
      %s116 = sphi 0, %s102
      %s120 = sphi 0, %s120
      %s122 = sphi 0, %s120
      %s123 = sphi 0, %s122
      %s137 = sphi 0, %s123
      %s141 = sphi 0, %s141
      %s143 = sphi 0, %s141
      %s144 = sphi 0, %s143
      %s158 = sphi 0, %s144
      %s162 = sphi 0, %s162
      %s164 = sphi 0, %s162
      %s165 = sphi 0, %s164
      %s179 = sphi 0, %s165
    $region4: #{tpu_custom_call.1} parent=1 // loop_header_branch
      %21 = sbr.rel (%p19) target = $region8
    $region5: #{tpu_custom_call.1} parent=1 // loop_body
      %s23 = ssub.s32 %s18, 1
      %s24 = ssub.s32 %s18, 2
      %s25 = sadd.s32 %s18, 1
      %s27 = sadd.s32 %s26, 1
      %p30 = scmp.eq.s32.totalorder %s18, 1
      %p31 = scmp.ne.s32.totalorder %s26, %s28
      %p32 = scmp.eq.s32.totalorder %s18, 0
      %p33 = por %p31, %p32
      %p34 = scmp.ne.s32.totalorder %s26, %s28
      %p35 = scmp.eq.s32.totalorder %s23, 1
      %p36 = por %p34, %p35
      %p37 = scmp.ne.s32.totalorder %s28, %s29
      %p38 = scmp.eq.s32.totalorder %s23, 0
      %p39 = por %p37, %p38
      %p40 = scmp.ne.s32.totalorder %s28, %s29
      %p41 = scmp.eq.s32.totalorder %s24, 1
      %p42 = por %p40, %p41
      %p44 = scmp.ne.s32.totalorder %s29, %s43
      %p45 = scmp.eq.s32.totalorder %s24, 0
      %p46 = por %p44, %p45
      %s47 = ssub.s32 %s18, %s25
      %p48 = scmp.eq.s32.totalorder %s47, 0
      %s50 = sadd.s32 %s49, 1
      %s51 = scalar_select %p48, %s49, %s50
      %p54 = pneg %p48
      %p55 = scmp.eq.s32.totalorder %s18, 1
      %p56 = por %p54, %p55
      %p57 = scmp.ne.s32.totalorder %s49, %s52
      %p58 = scmp.eq.s32.totalorder %s18, 0
      %p59 = por %p57, %p58
      %p60 = scmp.ne.s32.totalorder %s49, %s52
      %p61 = scmp.eq.s32.totalorder %s23, 1
      %p62 = por %p60, %p61
      %p63 = scmp.ne.s32.totalorder %s52, %s53
      %p64 = scmp.eq.s32.totalorder %s23, 0
      %p65 = por %p63, %p64
      %p66 = scmp.ne.s32.totalorder %s52, %s53
      %p67 = scmp.eq.s32.totalorder %s24, 1
      %p68 = por %p66, %p67
      %p70 = scmp.ne.s32.totalorder %s53, %s69
      %p71 = scmp.eq.s32.totalorder %s24, 0
      %p72 = por %p70, %p71
      %s73 = ssub.s32 %s18, %s25
      %p74 = scmp.eq.s32.totalorder %s73, 0
      %s76 = sadd.s32 %s75, 1
      %s77 = scalar_select %p74, %s75, %s76
      %p80 = pneg %p74
      %p81 = scmp.eq.s32.totalorder %s18, 1
      %p82 = por %p80, %p81
      %p83 = scmp.ne.s32.totalorder %s75, %s78
      %p84 = scmp.eq.s32.totalorder %s18, 0
      %p85 = por %p83, %p84
      %p86 = scmp.ne.s32.totalorder %s75, %s78
      %p87 = scmp.eq.s32.totalorder %s23, 1
      %p88 = por %p86, %p87
      %p89 = scmp.ne.s32.totalorder %s78, %s79
      %p90 = scmp.eq.s32.totalorder %s23, 0
      %p91 = por %p89, %p90
      %p92 = scmp.ne.s32.totalorder %s78, %s79
      %p93 = scmp.eq.s32.totalorder %s24, 1
      %p94 = por %p92, %p93
      %p96 = scmp.ne.s32.totalorder %s79, %s95
      %p97 = scmp.eq.s32.totalorder %s24, 0
      %p98 = por %p96, %p97
      %s100 = sadd.s32 %s99, 1
      %p103 = scmp.eq.s32.totalorder %s18, 1
      %p104 = scmp.ne.s32.totalorder %s99, %s101
      %p105 = scmp.eq.s32.totalorder %s18, 0
      %p106 = por %p104, %p105
      %p107 = scmp.ne.s32.totalorder %s99, %s101
      %p108 = scmp.eq.s32.totalorder %s23, 1
      %p109 = por %p107, %p108
      %p110 = scmp.ne.s32.totalorder %s101, %s102
      %p111 = scmp.eq.s32.totalorder %s23, 0
      %p112 = por %p110, %p111
      %p113 = scmp.ne.s32.totalorder %s101, %s102
      %p114 = scmp.eq.s32.totalorder %s24, 1
      %p115 = por %p113, %p114
      %p117 = scmp.ne.s32.totalorder %s102, %s116
      %p118 = scmp.eq.s32.totalorder %s24, 0
      %p119 = por %p117, %p118
      %s121 = sadd.s32 %s120, 1
      %p124 = scmp.eq.s32.totalorder %s18, 1
      %p125 = scmp.ne.s32.totalorder %s120, %s122
      %p126 = scmp.eq.s32.totalorder %s18, 0
      %p127 = por %p125, %p126
      %p128 = scmp.ne.s32.totalorder %s120, %s122
      %p129 = scmp.eq.s32.totalorder %s23, 1
      %p130 = por %p128, %p129
      %p131 = scmp.ne.s32.totalorder %s122, %s123
      %p132 = scmp.eq.s32.totalorder %s23, 0
      %p133 = por %p131, %p132
      %p134 = scmp.ne.s32.totalorder %s122, %s123
      %p135 = scmp.eq.s32.totalorder %s24, 1
      %p136 = por %p134, %p135
      %p138 = scmp.ne.s32.totalorder %s123, %s137
      %p139 = scmp.eq.s32.totalorder %s24, 0
      %p140 = por %p138, %p139
      %s142 = sadd.s32 %s141, 1
      %p145 = scmp.eq.s32.totalorder %s18, 1
      %p146 = scmp.ne.s32.totalorder %s141, %s143
      %p147 = scmp.eq.s32.totalorder %s18, 0
      %p148 = por %p146, %p147
      %p149 = scmp.ne.s32.totalorder %s141, %s143
      %p150 = scmp.eq.s32.totalorder %s23, 1
      %p151 = por %p149, %p150
      %p152 = scmp.ne.s32.totalorder %s143, %s144
      %p153 = scmp.eq.s32.totalorder %s23, 0
      %p154 = por %p152, %p153
      %p155 = scmp.ne.s32.totalorder %s143, %s144
      %p156 = scmp.eq.s32.totalorder %s24, 1
      %p157 = por %p155, %p156
      %p159 = scmp.ne.s32.totalorder %s144, %s158
      %p160 = scmp.eq.s32.totalorder %s24, 0
      %p161 = por %p159, %p160
      %s163 = sadd.s32 %s162, 1
      %p166 = scmp.eq.s32.totalorder %s18, 1
      %p167 = scmp.ne.s32.totalorder %s162, %s164
      %p168 = scmp.eq.s32.totalorder %s18, 0
      %p169 = por %p167, %p168
      %p170 = scmp.ne.s32.totalorder %s162, %s164
      %p171 = scmp.eq.s32.totalorder %s23, 1
      %p172 = por %p170, %p171
      %p173 = scmp.ne.s32.totalorder %s164, %s165
      %p174 = scmp.eq.s32.totalorder %s23, 0
      %p175 = por %p173, %p174
      %p176 = scmp.ne.s32.totalorder %s164, %s165
      %p177 = scmp.eq.s32.totalorder %s24, 1
      %p178 = por %p176, %p177
      %p180 = scmp.ne.s32.totalorder %s165, %s179
      %p181 = scmp.eq.s32.totalorder %s24, 0
      %p182 = por %p180, %p181
      %p183 = scmp.le.s32.totalorder 1, %s18
      %p184 = scmp.lt.s32.totalorder %s18, 3
      %p185 = pnand %p183, %p184
      %p186 = pneg %p185
      // Predicated region
      $region9: #{tpu_custom_call.1} parent=5 // pred_check
        _
      $region10: #{tpu_custom_call.1} parent=5 // pred_check_branch
        %188 = sbr.rel (%p185) target = $region12
      $region11: #{tpu_custom_call.1} parent=5 // pred_region
        %s189 = ssub.s32 %s18, 1
        // Predicated region
        $region13: #{tpu_custom_call.1} parent=11 // pred_check
          %p190 = pneg %p39
        $region14: #{tpu_custom_call.1} parent=11 // pred_check_branch
          %192 = sbr.rel (%p190) target = $region16
        $region15: #{tpu_custom_call.1} parent=11 // pred_region
          %194 = vsyncadd [#allocation4], 0
          %s195 = sshll.u32 %s0, 4
          %s196 = int_to_ptr.hbm [resolvable:$true] %s195
          %s197 = sshll.u32 [#allocation3], 4
          %s198 = int_to_ptr.vmem [resolvable:$true] %s197
          %203 = dma.hbm_to_vmem [thread:$0]  %s196, 512, %s198, [#allocation4], 64, 64, 4
        $region16: #{tpu_custom_call.1} parent=11 // pred_fallthru
          _
        // Predicated region
        $region17: #{tpu_custom_call.1} parent=11 // pred_check
          %p204 = pneg %p112
        $region18: #{tpu_custom_call.1} parent=11 // pred_check_branch
          %206 = sbr.rel (%p204) target = $region20
        $region19: #{tpu_custom_call.1} parent=11 // pred_region
          %208 = vsyncadd [#allocation10], 0
          %s210 = sshll.u32 %s3, 4
          %s211 = int_to_ptr.hbm [resolvable:$true] %s210
          %s212 = sshll.u32 [#allocation9], 4
          %s213 = int_to_ptr.vmem [resolvable:$true] %s212
          %215 = dma.hbm_to_vmem [thread:$0]  %s211, 128, %s213, [#allocation10]
        $region20: #{tpu_custom_call.1} parent=11 // pred_fallthru
          _
        // Predicated region
        $region21: #{tpu_custom_call.1} parent=11 // pred_check
          %p216 = pneg %p133
        $region22: #{tpu_custom_call.1} parent=11 // pred_check_branch
          %218 = sbr.rel (%p216) target = $region24
        $region23: #{tpu_custom_call.1} parent=11 // pred_region
          %220 = vsyncadd [#allocation10], 0
          %s221 = sshll.u32 %s4, 4
          %s222 = int_to_ptr.hbm [resolvable:$true] %s221
          %s223 = sshll.u32 [#allocation11], 4
          %s224 = int_to_ptr.vmem [resolvable:$true] %s223
          %229 = dma.hbm_to_vmem [thread:$0]  %s222, 2048, %s224, [#allocation10], 64, 64, 4
        $region24: #{tpu_custom_call.1} parent=11 // pred_fallthru
          _
        // Predicated region
        $region25: #{tpu_custom_call.1} parent=11 // pred_check
          %p230 = pneg %p154
        $region26: #{tpu_custom_call.1} parent=11 // pred_check_branch
          %232 = sbr.rel (%p230) target = $region28
        $region27: #{tpu_custom_call.1} parent=11 // pred_region
          _
        $region28: #{tpu_custom_call.1} parent=11 // pred_fallthru
          _
      $region12: #{tpu_custom_call.1} parent=5 // pred_fallthru
        _
      %p233 = scmp.lt.s32.totalorder %s18, 2
      // Predicated region
      $region29: #{tpu_custom_call.1} parent=5 // pred_check
        %p234 = pneg %p233
      $region30: #{tpu_custom_call.1} parent=5 // pred_check_branch
        %236 = sbr.rel (%p234) target = $region32
      $region31: #{tpu_custom_call.1} parent=5 // pred_region
        // Predicated region
        $region33: #{tpu_custom_call.1} parent=31 // pred_check
          %p237 = pneg %p59
        $region34: #{tpu_custom_call.1} parent=31 // pred_check_branch
          %239 = sbr.rel (%p237) target = $region36
        $region35: #{tpu_custom_call.1} parent=31 // pred_region
          %s240 = sand.u32 %s18, 1
          %s241 = scalar_lea.sflag [#allocation7], %s240
          %s242 = sand.u32 %s49, 1
          %s243 = smul.addr %s242, 64
          %s244 = scalar_lea.vmem [#allocation6], %s243
          %246 = vsyncadd %s241, 0
          %s247 = smul.addr %s18, 4
          %s248 = scalar_lea.hbm %s1, %s247
          %s249 = sshll.u32 %s248, 4
          %s250 = int_to_ptr.hbm [resolvable:$true] %s249
          %s251 = sshll.u32 %s244, 4
          %s252 = int_to_ptr.vmem [resolvable:$true] %s251
          %257 = dma.hbm_to_vmem [thread:$0]  %s250, 1024, %s252, %s241, 128, 64, 4
        $region36: #{tpu_custom_call.1} parent=31 // pred_fallthru
          _
        // Predicated region
        $region37: #{tpu_custom_call.1} parent=31 // pred_check
          %p258 = pneg %p85
        $region38: #{tpu_custom_call.1} parent=31 // pred_check_branch
          %260 = sbr.rel (%p258) target = $region40
        $region39: #{tpu_custom_call.1} parent=31 // pred_region
          %s261 = sand.u32 %s18, 1
          %s262 = scalar_lea.sflag [#allocation7], %s261
          %s263 = sand.u32 %s75, 1
          %s264 = smul.addr %s263, 128
          %s265 = scalar_lea.vmem [#allocation8], %s264
          %s266 = smul.u32 16, %s18
          %268 = vsyncadd %s262, 0
          %s269 = smul.addr %s266, 2
          %s270 = smul.addr %s269, 4
          %s271 = scalar_lea.hbm %s2, %s270
          %s272 = sshll.u32 %s271, 4
          %s273 = int_to_ptr.hbm [resolvable:$true] %s272
          %s274 = sshll.u32 %s265, 4
          %s275 = int_to_ptr.vmem [resolvable:$true] %s274
          %280 = dma.hbm_to_vmem [thread:$0]  %s273, 2048, %s275, %s262, 128, 128, 8
        $region40: #{tpu_custom_call.1} parent=31 // pred_fallthru
          _
      $region32: #{tpu_custom_call.1} parent=5 // pred_fallthru
        _
      %p281 = scmp.le.s32.totalorder 1, %s18
      %p282 = scmp.lt.s32.totalorder %s18, 3
      %p283 = pnand %p281, %p282
      %p284 = pneg %p283
      // Predicated region
      $region41: #{tpu_custom_call.1} parent=5 // pred_check
        _
      $region42: #{tpu_custom_call.1} parent=5 // pred_check_branch
        %286 = sbr.rel (%p283) target = $region44
      $region43: #{tpu_custom_call.1} parent=5 // pred_region
        %s287 = ssub.s32 %s18, 1
        // Predicated region
        $region45: #{tpu_custom_call.1} parent=43 // pred_check
          %p288 = pneg %p39
        $region46: #{tpu_custom_call.1} parent=43 // pred_check_branch
          %290 = sbr.rel (%p288) target = $region48
        $region47: #{tpu_custom_call.1} parent=43 // pred_region
          %292 = dma.done [#allocation4], 512
        $region48: #{tpu_custom_call.1} parent=43 // pred_fallthru
          _
        %s293 = sand.u32 %s23, 1
        %s294 = scalar_lea.sflag [#allocation7], %s293
        %s295 = sand.u32 %s52, 1
        %s296 = smul.addr %s295, 64
        %s297 = scalar_lea.vmem [#allocation6], %s296
        // Predicated region
        $region49: #{tpu_custom_call.1} parent=43 // pred_check
          %p298 = pneg %p65
        $region50: #{tpu_custom_call.1} parent=43 // pred_check_branch
          %300 = sbr.rel (%p298) target = $region52
        $region51: #{tpu_custom_call.1} parent=43 // pred_region
          %302 = dma.done %s294, 1024
        $region52: #{tpu_custom_call.1} parent=43 // pred_fallthru
          _
        %s303 = sand.u32 %s23, 1
        %s304 = scalar_lea.sflag [#allocation7], %s303
        %s305 = sand.u32 %s78, 1
        %s306 = smul.addr %s305, 128
        %s307 = scalar_lea.vmem [#allocation8], %s306
        // Predicated region
        $region53: #{tpu_custom_call.1} parent=43 // pred_check
          %p308 = pneg %p91
        $region54: #{tpu_custom_call.1} parent=43 // pred_check_branch
          %310 = sbr.rel (%p308) target = $region56
        $region55: #{tpu_custom_call.1} parent=43 // pred_region
          %312 = dma.done %s304, 2048
        $region56: #{tpu_custom_call.1} parent=43 // pred_fallthru
          _
        // Predicated region
        $region57: #{tpu_custom_call.1} parent=43 // pred_check
          %p313 = pneg %p112
        $region58: #{tpu_custom_call.1} parent=43 // pred_check_branch
          %315 = sbr.rel (%p313) target = $region60
        $region59: #{tpu_custom_call.1} parent=43 // pred_region
          %317 = dma.done [#allocation10], 128
        $region60: #{tpu_custom_call.1} parent=43 // pred_fallthru
          _
        // Predicated region
        $region61: #{tpu_custom_call.1} parent=43 // pred_check
          %p318 = pneg %p133
        $region62: #{tpu_custom_call.1} parent=43 // pred_check_branch
          %320 = sbr.rel (%p318) target = $region64
        $region63: #{tpu_custom_call.1} parent=43 // pred_region
          %322 = dma.done [#allocation10], 2048
        $region64: #{tpu_custom_call.1} parent=43 // pred_fallthru
          _
        %p323 = pneg %p39
        %p324 = pneg %p36
        %s325 = sand.u32 %s23, 1
        %s326 = scalar_lea.sflag [#allocation7], %s325
        %s327 = sand.u32 %s52, 1
        %s328 = smul.addr %s327, 64
        %s329 = scalar_lea.vmem [#allocation6], %s328
        %p330 = pneg %p65
        %p331 = pneg %p62
        %s332 = sand.u32 %s23, 1
        %s333 = scalar_lea.sflag [#allocation7], %s332
        %s334 = sand.u32 %s78, 1
        %s335 = smul.addr %s334, 128
        %s336 = scalar_lea.vmem [#allocation8], %s335
        %p337 = pneg %p91
        %p338 = pneg %p88
        %p339 = pneg %p112
        %p340 = pneg %p109
        %p341 = pneg %p133
        %p342 = pneg %p130
        %p343 = pneg %p154
        %p344 = pneg %p151
        %p345 = pneg %p175
        %p346 = pneg %p172
        %s347 = smul.u32 16, %s23
        %p348 = scmp.eq.s32.totalorder %s23, 0
        // Predicated region
        $region65: #{tpu_custom_call.1} parent=43 // pred_check
          %p349 = pneg %p348
        $region66: #{tpu_custom_call.1} parent=43 // pred_check_branch
          %351 = sbr.rel (%p349) target = $region68
        $region67: #{tpu_custom_call.1} parent=43 // pred_region
          %352 = vst [vmem:[#allocation2] sm:$0xff] 0.0
          %353 = vst [vmem:[#allocation2 + $0x8] sm:$0xff] 0.0
          %354 = vst [vmem:[#allocation2 + $0x10] sm:$0xff] 0.0
          %355 = vst [vmem:[#allocation2 + $0x18] sm:$0xff] 0.0
          %356 = vst [vmem:[#allocation2 + $0x20] sm:$0xff] 0.0
          %357 = vst [vmem:[#allocation2 + $0x28] sm:$0xff] 0.0
          %358 = vst [vmem:[#allocation2 + $0x30] sm:$0xff] 0.0
          %359 = vst [vmem:[#allocation2 + $0x38] sm:$0xff] 0.0
          %360 = vst [vmem:[#allocation2 + $0x40] sm:$0xff] 0.0
          %361 = vst [vmem:[#allocation2 + $0x48] sm:$0xff] 0.0
          %362 = vst [vmem:[#allocation2 + $0x50] sm:$0xff] 0.0
          %363 = vst [vmem:[#allocation2 + $0x58] sm:$0xff] 0.0
          %364 = vst [vmem:[#allocation2 + $0x60] sm:$0xff] 0.0
          %365 = vst [vmem:[#allocation2 + $0x68] sm:$0xff] 0.0
          %366 = vst [vmem:[#allocation2 + $0x70] sm:$0xff] 0.0
          %367 = vst [vmem:[#allocation2 + $0x78] sm:$0xff] 0.0
        $region68: #{tpu_custom_call.1} parent=43 // pred_fallthru
          _
        %v368 = vld [vmem:[#allocation3] sm:$0xf]
        %v369 = vld [vmem:[#allocation3 + $0x4] sm:$0xf]
        %v370 = vld [vmem:[#allocation3 + $0x8] sm:$0xf]
        %v371 = vld [vmem:[#allocation3 + $0xc] sm:$0xf]
        %v372 = vld [vmem:[#allocation3 + $0x10] sm:$0xf]
        %v373 = vld [vmem:[#allocation3 + $0x14] sm:$0xf]
        %v374 = vld [vmem:[#allocation3 + $0x18] sm:$0xf]
        %v375 = vld [vmem:[#allocation3 + $0x1c] sm:$0xf]
        %v376 = vld [vmem:[%s297] sm:$0xf]
        %v377 = vld [vmem:[%s297 + $0x4] sm:$0xf]
        %v378 = vld [vmem:[%s297 + $0x8] sm:$0xf]
        %v379 = vld [vmem:[%s297 + $0xc] sm:$0xf]
        %v380 = vld [vmem:[%s297 + $0x10] sm:$0xf]
        %v381 = vld [vmem:[%s297 + $0x14] sm:$0xf]
        %v382 = vld [vmem:[%s297 + $0x18] sm:$0xf]
        %v383 = vld [vmem:[%s297 + $0x1c] sm:$0xf]
        %v384 = vld [vmem:[%s297 + $0x20] sm:$0xf]
        %v385 = vld [vmem:[%s297 + $0x24] sm:$0xf]
        %v386 = vld [vmem:[%s297 + $0x28] sm:$0xf]
        %v387 = vld [vmem:[%s297 + $0x2c] sm:$0xf]
        %v388 = vld [vmem:[%s297 + $0x30] sm:$0xf]
        %v389 = vld [vmem:[%s297 + $0x34] sm:$0xf]
        %v390 = vld [vmem:[%s297 + $0x38] sm:$0xf]
        %v391 = vld [vmem:[%s297 + $0x3c] sm:$0xf]
        %v400 = vunpack.c.l.b16 %v368
        %v401 = vunpack.c.l.b16 %v369
        %v402 = vunpack.c.l.b16 %v370
        %v403 = vunpack.c.l.b16 %v371
        %v404 = vunpack.c.l.b16 %v372
        %v405 = vunpack.c.l.b16 %v373
        %v406 = vunpack.c.l.b16 %v374
        %v407 = vunpack.c.l.b16 %v375
        %v408 = vpack.c.b16 %v401, %v400
        %v409 = vpack.c.b16 %v403, %v402
        %v410 = vpack.c.b16 %v405, %v404
        %v411 = vpack.c.b16 %v407, %v406
        %v432 = vunpack.c.l.b16 %v376
        %v433 = vunpack.c.l.b16 %v377
        %v434 = vunpack.c.l.b16 %v378
        %v435 = vunpack.c.l.b16 %v379
        %v436 = vunpack.c.l.b16 %v380
        %v437 = vunpack.c.l.b16 %v381
        %v438 = vunpack.c.l.b16 %v382
        %v439 = vunpack.c.l.b16 %v383
        %v440 = vunpack.c.l.b16 %v384
        %v441 = vunpack.c.l.b16 %v385
        %v442 = vunpack.c.l.b16 %v386
        %v443 = vunpack.c.l.b16 %v387
        %v444 = vunpack.c.l.b16 %v388
        %v445 = vunpack.c.l.b16 %v389
        %v446 = vunpack.c.l.b16 %v390
        %v447 = vunpack.c.l.b16 %v391
        %v448 = vpack.c.b16 %v433, %v432
        %v449 = vpack.c.b16 %v435, %v434
        %v450 = vpack.c.b16 %v437, %v436
        %v451 = vpack.c.b16 %v439, %v438
        %v452 = vpack.c.b16 %v441, %v440
        %v453 = vpack.c.b16 %v443, %v442
        %v454 = vpack.c.b16 %v445, %v444
        %v455 = vpack.c.b16 %v447, %v446
        %464 = vmatpush.bf16.msra.mxu0 %v455
        %465 = vmatpush.bf16.msra.mxu0 %v454
        %466 = vmatpush.bf16.msra.mxu0 %v453
        %467 = vmatpush.bf16.msra.mxu0 %v452
        %468 = vmatpush.bf16.msra.mxu0 %v451
        %469 = vmatpush.bf16.msra.mxu0 %v450
        %470 = vmatpush.bf16.msra.mxu0 %v449
        %471 = vmatpush.bf16.msra.mxu0 %v448
        %472 = vmatmul.bf16.gmra.mxu0 %v408
        %v473 = vpop.f32.mrf.mxu0
        %v474 = vadd.f32 0.0, %v473
        %v475 = vpop.f32.mrf.mxu0
        %v476 = vadd.f32 0.0, %v475
        %477 = vmatmul.bf16.gmra.mxu0 %v409
        %v478 = vpop.f32.mrf.mxu0
        %v479 = vadd.f32 0.0, %v478
        %v480 = vpop.f32.mrf.mxu0
        %v481 = vadd.f32 0.0, %v480
        %482 = vmatmul.bf16.gmra.mxu0 %v410
        %v483 = vpop.f32.mrf.mxu0
        %v484 = vadd.f32 0.0, %v483
        %v485 = vpop.f32.mrf.mxu0
        %v486 = vadd.f32 0.0, %v485
        %487 = vmatmul.bf16.gmra.mxu0 %v411
        %v488 = vpop.f32.mrf.mxu0
        %v489 = vadd.f32 0.0, %v488
        %v490 = vpop.f32.mrf.mxu0
        %v491 = vadd.f32 0.0, %v490
        %492 = vdwg.mxu0
        %v493 = vadd.f32 %v474, %v476
        %v494 = vadd.f32 %v493, %v479
        %v495 = vadd.f32 %v494, %v481
        %v496 = vadd.f32 %v495, %v484
        %v497 = vadd.f32 %v496, %v486
        %v498 = vadd.f32 %v497, %v489
        %v499 = vadd.f32 %v498, %v491
        %v500 = vrot.slane %v499, 4
        %v501 = vadd.f32 %v499, %v500
        %v502 = vrot.slane %v501, 2
        %v503 = vadd.f32 %v501, %v502
        %v504 = vrot.slane %v503, 1
        %v505 = vadd.f32 %v503, %v504
        %v506 = vmul.f32 %v505, 0.015625
        %v507 = vmul.f32 %v474, %v474
        %v508 = vmul.f32 %v476, %v476
        %v509 = vmul.f32 %v479, %v479
        %v510 = vmul.f32 %v481, %v481
        %v511 = vmul.f32 %v484, %v484
        %v512 = vmul.f32 %v486, %v486
        %v513 = vmul.f32 %v489, %v489
        %v514 = vmul.f32 %v491, %v491
        %v515 = vadd.f32 %v507, %v508
        %v516 = vadd.f32 %v515, %v509
        %v517 = vadd.f32 %v516, %v510
        %v518 = vadd.f32 %v517, %v511
        %v519 = vadd.f32 %v518, %v512
        %v520 = vadd.f32 %v519, %v513
        %v521 = vadd.f32 %v520, %v514
        %v522 = vrot.slane %v521, 4
        %v523 = vadd.f32 %v521, %v522
        %v524 = vrot.slane %v523, 2
        %v525 = vadd.f32 %v523, %v524
        %v526 = vrot.slane %v525, 1
        %v527 = vadd.f32 %v525, %v526
        %v528 = vmul.f32 %v527, 0.015625
        %v529 = vmul.f32 %v506, %v506
        %v530 = vsub.f32 %v528, %v529
        %v531 = vmax.f32 %v530, 0.0
        %s532 = smul.u32 %s23, 128
        %s533 = sshra.s32 %s532, 7
        %s534 = sand.u32 %s532, 127
        %s535 = smul.addr %s533, 4
        %s536 = scalar_lea.vmem [#allocation9], %s535
        %v537 = vld [vmem:[%s536] sm:$0xf]
        %v538 = vadd.f32 %v531, 1e-05
        %v539 = vrsqrt.pop %v538
        %v540 = vmul.f32 %v539, %v538
        %v541 = vmul.f32 %v540, %v539
        %v542 = vmul.f32 0.5, %v541
        %v543 = vsub.f32 1.5, %v542
        %v544 = vmul.f32 %v539, %v543
        %vm545 = vweird.f32 %v538
        %vm546 = vweird.f32 %v539
        %vm547 = vmor %vm545, %vm546
        %v548 = vsel %vm547, %v539, %v544
        %v549 = vmul.f32 %v537, %v548
        %v550 = vmul.f32 %v506, %v549
        %v552 = vrot.slane %v550, 7
        %v554 = vsub.f32 %v537, %v552
        %v555 = vperm.slane %v549, 0
        %v556 = vmul.f32 %v474, %v555
        %v557 = vmul.f32 %v476, %v555
        %v558 = vmul.f32 %v479, %v555
        %v559 = vmul.f32 %v481, %v555
        %v560 = vmul.f32 %v484, %v555
        %v561 = vmul.f32 %v486, %v555
        %v562 = vmul.f32 %v489, %v555
        %v563 = vmul.f32 %v491, %v555
        %v564 = vperm.slane %v554, 1
        %v565 = vadd.f32 %v556, %v564
        %v566 = vadd.f32 %v557, %v564
        %v567 = vadd.f32 %v558, %v564
        %v568 = vadd.f32 %v559, %v564
        %v569 = vadd.f32 %v560, %v564
        %v570 = vadd.f32 %v561, %v564
        %v571 = vadd.f32 %v562, %v564
        %v572 = vadd.f32 %v563, %v564
        %v573 = vmax.f32 %v565, 0.0
        %v574 = vmax.f32 %v566, 0.0
        %v575 = vmax.f32 %v567, 0.0
        %v576 = vmax.f32 %v568, 0.0
        %v577 = vmax.f32 %v569, 0.0
        %v578 = vmax.f32 %v570, 0.0
        %v579 = vmax.f32 %v571, 0.0
        %v580 = vmax.f32 %v572, 0.0
        %v581 = vld [vmem:[#allocation2] sm:$0xff]
        %v582 = vld [vmem:[#allocation2 + $0x8] sm:$0xff]
        %v583 = vld [vmem:[#allocation2 + $0x10] sm:$0xff]
        %v584 = vld [vmem:[#allocation2 + $0x18] sm:$0xff]
        %v585 = vld [vmem:[#allocation2 + $0x20] sm:$0xff]
        %v586 = vld [vmem:[#allocation2 + $0x28] sm:$0xff]
        %v587 = vld [vmem:[#allocation2 + $0x30] sm:$0xff]
        %v588 = vld [vmem:[#allocation2 + $0x38] sm:$0xff]
        %v589 = vld [vmem:[#allocation2 + $0x40] sm:$0xff]
        %v590 = vld [vmem:[#allocation2 + $0x48] sm:$0xff]
        %v591 = vld [vmem:[#allocation2 + $0x50] sm:$0xff]
        %v592 = vld [vmem:[#allocation2 + $0x58] sm:$0xff]
        %v593 = vld [vmem:[#allocation2 + $0x60] sm:$0xff]
        %v594 = vld [vmem:[#allocation2 + $0x68] sm:$0xff]
        %v595 = vld [vmem:[#allocation2 + $0x70] sm:$0xff]
        %v596 = vld [vmem:[#allocation2 + $0x78] sm:$0xff]
        %v597 = vpack.c.bf16 %v574, %v573
        %v598 = vpack.c.bf16 %v576, %v575
        %v599 = vpack.c.bf16 %v578, %v577
        %v600 = vpack.c.bf16 %v580, %v579
        %v601 = vld [vmem:[%s307] sm:$0xff]
        %v602 = vld [vmem:[%s307 + $0x8] sm:$0xff]
        %v603 = vld [vmem:[%s307 + $0x10] sm:$0xff]
        %v604 = vld [vmem:[%s307 + $0x18] sm:$0xff]
        %v605 = vld [vmem:[%s307 + $0x20] sm:$0xff]
        %v606 = vld [vmem:[%s307 + $0x28] sm:$0xff]
        %v607 = vld [vmem:[%s307 + $0x30] sm:$0xff]
        %v608 = vld [vmem:[%s307 + $0x38] sm:$0xff]
        %v609 = vld [vmem:[%s307 + $0x40] sm:$0xff]
        %v610 = vld [vmem:[%s307 + $0x48] sm:$0xff]
        %v611 = vld [vmem:[%s307 + $0x50] sm:$0xff]
        %v612 = vld [vmem:[%s307 + $0x58] sm:$0xff]
        %v613 = vld [vmem:[%s307 + $0x60] sm:$0xff]
        %v614 = vld [vmem:[%s307 + $0x68] sm:$0xff]
        %v615 = vld [vmem:[%s307 + $0x70] sm:$0xff]
        %v616 = vld [vmem:[%s307 + $0x78] sm:$0xff]
        %v633 = vunpack.c.l.b16 %v601
        %v634 = vunpack.c.h.b16 %v601
        %v635 = vunpack.c.l.b16 %v602
        %v636 = vunpack.c.h.b16 %v602
        %v637 = vunpack.c.l.b16 %v603
        %v638 = vunpack.c.h.b16 %v603
        %v639 = vunpack.c.l.b16 %v604
        %v640 = vunpack.c.h.b16 %v604
        %v641 = vunpack.c.l.b16 %v605
        %v642 = vunpack.c.h.b16 %v605
        %v643 = vunpack.c.l.b16 %v606
        %v644 = vunpack.c.h.b16 %v606
        %v645 = vunpack.c.l.b16 %v607
        %v646 = vunpack.c.h.b16 %v607
        %v647 = vunpack.c.l.b16 %v608
        %v648 = vunpack.c.h.b16 %v608
        %v649 = vunpack.c.l.b16 %v609
        %v650 = vunpack.c.h.b16 %v609
        %v651 = vunpack.c.l.b16 %v610
        %v652 = vunpack.c.h.b16 %v610
        %v653 = vunpack.c.l.b16 %v611
        %v654 = vunpack.c.h.b16 %v611
        %v655 = vunpack.c.l.b16 %v612
        %v656 = vunpack.c.h.b16 %v612
        %v657 = vunpack.c.l.b16 %v613
        %v658 = vunpack.c.h.b16 %v613
        %v659 = vunpack.c.l.b16 %v614
        %v660 = vunpack.c.h.b16 %v614
        %v661 = vunpack.c.l.b16 %v615
        %v662 = vunpack.c.h.b16 %v615
        %v663 = vunpack.c.l.b16 %v616
        %v664 = vunpack.c.h.b16 %v616
        %v665 = vpack.c.b16 %v635, %v633
        %v666 = vpack.c.b16 %v636, %v634
        %v667 = vpack.c.b16 %v639, %v637
        %v668 = vpack.c.b16 %v640, %v638
        %v669 = vpack.c.b16 %v643, %v641
        %v670 = vpack.c.b16 %v644, %v642
        %v671 = vpack.c.b16 %v647, %v645
        %v672 = vpack.c.b16 %v648, %v646
        %v673 = vpack.c.b16 %v651, %v649
        %v674 = vpack.c.b16 %v652, %v650
        %v675 = vpack.c.b16 %v655, %v653
        %v676 = vpack.c.b16 %v656, %v654
        %v677 = vpack.c.b16 %v659, %v657
        %v678 = vpack.c.b16 %v660, %v658
        %v679 = vpack.c.b16 %v663, %v661
        %v680 = vpack.c.b16 %v664, %v662
        %697 = vmatpush.bf16.msra.mxu0 %v679
        %698 = vmatpush.bf16.msra.mxu0 %v677
        %699 = vmatpush.bf16.msra.mxu0 %v675
        %700 = vmatpush.bf16.msra.mxu0 %v673
        %701 = vmatpush.bf16.msra.mxu0 %v671
        %702 = vmatpush.bf16.msra.mxu0 %v669
        %703 = vmatpush.bf16.msra.mxu0 %v667
        %704 = vmatpush.bf16.msra.mxu0 %v665
        %705 = vmatmul.bf16.gmra.mxu0 %v597
        %v706 = vpop.f32.mrf.mxu0
        %v707 = vadd.f32 0.0, %v706
        %v708 = vpop.f32.mrf.mxu0
        %v709 = vadd.f32 0.0, %v708
        %710 = vmatmul.bf16.gmra.mxu0 %v598
        %v711 = vpop.f32.mrf.mxu0
        %v712 = vadd.f32 0.0, %v711
        %v713 = vpop.f32.mrf.mxu0
        %v714 = vadd.f32 0.0, %v713
        %715 = vmatmul.bf16.gmra.mxu0 %v599
        %v716 = vpop.f32.mrf.mxu0
        %v717 = vadd.f32 0.0, %v716
        %v718 = vpop.f32.mrf.mxu0
        %v719 = vadd.f32 0.0, %v718
        %720 = vmatmul.bf16.gmra.mxu0 %v600
        %v721 = vpop.f32.mrf.mxu0
        %v722 = vadd.f32 0.0, %v721
        %v723 = vpop.f32.mrf.mxu0
        %v724 = vadd.f32 0.0, %v723
        %725 = vdwg.mxu0
        %726 = vmatpush.bf16.msra.mxu0 %v680
        %727 = vmatpush.bf16.msra.mxu0 %v678
        %728 = vmatpush.bf16.msra.mxu0 %v676
        %729 = vmatpush.bf16.msra.mxu0 %v674
        %730 = vmatpush.bf16.msra.mxu0 %v672
        %731 = vmatpush.bf16.msra.mxu0 %v670
        %732 = vmatpush.bf16.msra.mxu0 %v668
        %733 = vmatpush.bf16.msra.mxu0 %v666
        %734 = vmatmul.bf16.gmra.mxu0 %v597
        %v735 = vpop.f32.mrf.mxu0
        %v736 = vadd.f32 0.0, %v735
        %v737 = vpop.f32.mrf.mxu0
        %v738 = vadd.f32 0.0, %v737
        %739 = vmatmul.bf16.gmra.mxu0 %v598
        %v740 = vpop.f32.mrf.mxu0
        %v741 = vadd.f32 0.0, %v740
        %v742 = vpop.f32.mrf.mxu0
        %v743 = vadd.f32 0.0, %v742
        %744 = vmatmul.bf16.gmra.mxu0 %v599
        %v745 = vpop.f32.mrf.mxu0
        %v746 = vadd.f32 0.0, %v745
        %v747 = vpop.f32.mrf.mxu0
        %v748 = vadd.f32 0.0, %v747
        %749 = vmatmul.bf16.gmra.mxu0 %v600
        %v750 = vpop.f32.mrf.mxu0
        %v751 = vadd.f32 0.0, %v750
        %v752 = vpop.f32.mrf.mxu0
        %v753 = vadd.f32 0.0, %v752
        %754 = vdwg.mxu0
        %v755 = vadd.f32 %v581, %v707
        %v756 = vadd.f32 %v582, %v736
        %v757 = vadd.f32 %v583, %v709
        %v758 = vadd.f32 %v584, %v738
        %v759 = vadd.f32 %v585, %v712
        %v760 = vadd.f32 %v586, %v741
        %v761 = vadd.f32 %v587, %v714
        %v762 = vadd.f32 %v588, %v743
        %v763 = vadd.f32 %v589, %v717
        %v764 = vadd.f32 %v590, %v746
        %v765 = vadd.f32 %v591, %v719
        %v766 = vadd.f32 %v592, %v748
        %v767 = vadd.f32 %v593, %v722
        %v768 = vadd.f32 %v594, %v751
        %v769 = vadd.f32 %v595, %v724
        %v770 = vadd.f32 %v596, %v753
        %771 = vst [vmem:[#allocation2] sm:$0xff] %v755
        %772 = vst [vmem:[#allocation2 + $0x8] sm:$0xff] %v756
        %773 = vst [vmem:[#allocation2 + $0x10] sm:$0xff] %v757
        %774 = vst [vmem:[#allocation2 + $0x18] sm:$0xff] %v758
        %775 = vst [vmem:[#allocation2 + $0x20] sm:$0xff] %v759
        %776 = vst [vmem:[#allocation2 + $0x28] sm:$0xff] %v760
        %777 = vst [vmem:[#allocation2 + $0x30] sm:$0xff] %v761
        %778 = vst [vmem:[#allocation2 + $0x38] sm:$0xff] %v762
        %779 = vst [vmem:[#allocation2 + $0x40] sm:$0xff] %v763
        %780 = vst [vmem:[#allocation2 + $0x48] sm:$0xff] %v764
        %781 = vst [vmem:[#allocation2 + $0x50] sm:$0xff] %v765
        %782 = vst [vmem:[#allocation2 + $0x58] sm:$0xff] %v766
        %783 = vst [vmem:[#allocation2 + $0x60] sm:$0xff] %v767
        %784 = vst [vmem:[#allocation2 + $0x68] sm:$0xff] %v768
        %785 = vst [vmem:[#allocation2 + $0x70] sm:$0xff] %v769
        %786 = vst [vmem:[#allocation2 + $0x78] sm:$0xff] %v770
        %p787 = scmp.eq.s32.totalorder %s23, 1
        // Predicated region
        $region69: #{tpu_custom_call.1} parent=43 // pred_check
          %p788 = pneg %p787
        $region70: #{tpu_custom_call.1} parent=43 // pred_check_branch
          %790 = sbr.rel (%p788) target = $region72
        $region71: #{tpu_custom_call.1} parent=43 // pred_region
          %v791 = vld [vmem:[#allocation2] sm:$0xff]
          %v792 = vld [vmem:[#allocation2 + $0x8] sm:$0xff]
          %v793 = vld [vmem:[#allocation2 + $0x10] sm:$0xff]
          %v794 = vld [vmem:[#allocation2 + $0x18] sm:$0xff]
          %v795 = vld [vmem:[#allocation2 + $0x20] sm:$0xff]
          %v796 = vld [vmem:[#allocation2 + $0x28] sm:$0xff]
          %v797 = vld [vmem:[#allocation2 + $0x30] sm:$0xff]
          %v798 = vld [vmem:[#allocation2 + $0x38] sm:$0xff]
          %v799 = vld [vmem:[#allocation2 + $0x40] sm:$0xff]
          %v800 = vld [vmem:[#allocation2 + $0x48] sm:$0xff]
          %v801 = vld [vmem:[#allocation2 + $0x50] sm:$0xff]
          %v802 = vld [vmem:[#allocation2 + $0x58] sm:$0xff]
          %v803 = vld [vmem:[#allocation2 + $0x60] sm:$0xff]
          %v804 = vld [vmem:[#allocation2 + $0x68] sm:$0xff]
          %v805 = vld [vmem:[#allocation2 + $0x70] sm:$0xff]
          %v806 = vld [vmem:[#allocation2 + $0x78] sm:$0xff]
          %v807 = vadd.f32 %v791, %v793
          %v808 = vadd.f32 %v807, %v795
          %v809 = vadd.f32 %v808, %v797
          %v810 = vadd.f32 %v809, %v799
          %v811 = vadd.f32 %v810, %v801
          %v812 = vadd.f32 %v811, %v803
          %v813 = vadd.f32 %v812, %v805
          %v814 = vrot.slane %v813, 4
          %v815 = vadd.f32 %v813, %v814
          %v816 = vrot.slane %v815, 2
          %v817 = vadd.f32 %v815, %v816
          %v818 = vrot.slane %v817, 1
          %v819 = vadd.f32 %v817, %v818
          %v820 = vadd.f32 %v792, %v794
          %v821 = vadd.f32 %v820, %v796
          %v822 = vadd.f32 %v821, %v798
          %v823 = vadd.f32 %v822, %v800
          %v824 = vadd.f32 %v823, %v802
          %v825 = vadd.f32 %v824, %v804
          %v826 = vadd.f32 %v825, %v806
          %v827 = vrot.slane %v826, 4
          %v828 = vadd.f32 %v826, %v827
          %v829 = vrot.slane %v828, 2
          %v830 = vadd.f32 %v828, %v829
          %v831 = vrot.slane %v830, 1
          %v832 = vadd.f32 %v830, %v831
          %v833 = vmul.f32 %v819, 0.015625
          %v834 = vmul.f32 %v832, 0.015625
          %v835 = vmul.f32 %v791, %v791
          %v836 = vmul.f32 %v792, %v792
          %v837 = vmul.f32 %v793, %v793
          %v838 = vmul.f32 %v794, %v794
          %v839 = vmul.f32 %v795, %v795
          %v840 = vmul.f32 %v796, %v796
          %v841 = vmul.f32 %v797, %v797
          %v842 = vmul.f32 %v798, %v798
          %v843 = vmul.f32 %v799, %v799
          %v844 = vmul.f32 %v800, %v800
          %v845 = vmul.f32 %v801, %v801
          %v846 = vmul.f32 %v802, %v802
          %v847 = vmul.f32 %v803, %v803
          %v848 = vmul.f32 %v804, %v804
          %v849 = vmul.f32 %v805, %v805
          %v850 = vmul.f32 %v806, %v806
          %v851 = vadd.f32 %v835, %v837
          %v852 = vadd.f32 %v851, %v839
          %v853 = vadd.f32 %v852, %v841
          %v854 = vadd.f32 %v853, %v843
          %v855 = vadd.f32 %v854, %v845
          %v856 = vadd.f32 %v855, %v847
          %v857 = vadd.f32 %v856, %v849
          %v858 = vrot.slane %v857, 4
          %v859 = vadd.f32 %v857, %v858
          %v860 = vrot.slane %v859, 2
          %v861 = vadd.f32 %v859, %v860
          %v862 = vrot.slane %v861, 1
          %v863 = vadd.f32 %v861, %v862
          %v864 = vadd.f32 %v836, %v838
          %v865 = vadd.f32 %v864, %v840
          %v866 = vadd.f32 %v865, %v842
          %v867 = vadd.f32 %v866, %v844
          %v868 = vadd.f32 %v867, %v846
          %v869 = vadd.f32 %v868, %v848
          %v870 = vadd.f32 %v869, %v850
          %v871 = vrot.slane %v870, 4
          %v872 = vadd.f32 %v870, %v871
          %v873 = vrot.slane %v872, 2
          %v874 = vadd.f32 %v872, %v873
          %v875 = vrot.slane %v874, 1
          %v876 = vadd.f32 %v874, %v875
          %v877 = vmul.f32 %v863, 0.015625
          %v878 = vmul.f32 %v876, 0.015625
          %v879 = vmul.f32 %v833, %v833
          %v880 = vmul.f32 %v834, %v834
          %v881 = vsub.f32 %v877, %v879
          %v882 = vsub.f32 %v878, %v880
          %v883 = vmax.f32 %v881, 0.0
          %v884 = vmax.f32 %v882, 0.0
          %s885 = scalar_lea.vmem [#allocation9], 2
          %v886 = vld [vmem:[%s885] ss:$4 sm:$0x3]
          %v887 = vadd.f32 %v883, 1e-05
          %v888 = vadd.f32 %v884, 1e-05
          %v889 = vrsqrt.pop %v887
          %v890 = vmul.f32 %v889, %v887
          %v891 = vmul.f32 %v890, %v889
          %v892 = vmul.f32 0.5, %v891
          %v893 = vsub.f32 1.5, %v892
          %v894 = vmul.f32 %v889, %v893
          %vm895 = vweird.f32 %v887
          %vm896 = vweird.f32 %v889
          %vm897 = vmor %vm895, %vm896
          %v898 = vsel %vm897, %v889, %v894
          %v899 = vrsqrt.pop %v888
          %v900 = vmul.f32 %v899, %v888
          %v901 = vmul.f32 %v900, %v899
          %v902 = vmul.f32 0.5, %v901
          %v903 = vsub.f32 1.5, %v902
          %v904 = vmul.f32 %v899, %v903
          %vm905 = vweird.f32 %v888
          %vm906 = vweird.f32 %v899
          %vm907 = vmor %vm905, %vm906
          %v908 = vsel %vm907, %v899, %v904
          %v911 = vrot.slane %v908, 7
          %vm912 = vcmask 1040384
          %v913 = vsel %vm912, %v898, %v911
          %v915 = vmul.f32 %v886, %v913
          %s916 = scalar_lea.vmem [#allocation9], 3
          %v917 = vld [vmem:[%s916] ss:$4 sm:$0x3]
          %v919 = vperm.slane %v915, 0
          %v920 = vperm.slane %v915, 1
          %v923 = vmul.f32 %v833, %v919
          %v924 = vmul.f32 %v834, %v920
          %v927 = vrot.slane %v924, 7
          %v928 = vsel %vm912, %v923, %v927
          %v930 = vsub.f32 %v917, %v928
          %v931 = vmul.f32 %v791, %v919
          %v932 = vmul.f32 %v792, %v920
          %v933 = vmul.f32 %v793, %v919
          %v934 = vmul.f32 %v794, %v920
          %v935 = vmul.f32 %v795, %v919
          %v936 = vmul.f32 %v796, %v920
          %v937 = vmul.f32 %v797, %v919
          %v938 = vmul.f32 %v798, %v920
          %v939 = vmul.f32 %v799, %v919
          %v940 = vmul.f32 %v800, %v920
          %v941 = vmul.f32 %v801, %v919
          %v942 = vmul.f32 %v802, %v920
          %v943 = vmul.f32 %v803, %v919
          %v944 = vmul.f32 %v804, %v920
          %v945 = vmul.f32 %v805, %v919
          %v946 = vmul.f32 %v806, %v920
          %v948 = vperm.slane %v930, 0
          %v949 = vperm.slane %v930, 1
          %v952 = vadd.f32 %v931, %v948
          %v953 = vadd.f32 %v932, %v949
          %v954 = vadd.f32 %v933, %v948
          %v955 = vadd.f32 %v934, %v949
          %v956 = vadd.f32 %v935, %v948
          %v957 = vadd.f32 %v936, %v949
          %v958 = vadd.f32 %v937, %v948
          %v959 = vadd.f32 %v938, %v949
          %v960 = vadd.f32 %v939, %v948
          %v961 = vadd.f32 %v940, %v949
          %v962 = vadd.f32 %v941, %v948
          %v963 = vadd.f32 %v942, %v949
          %v964 = vadd.f32 %v943, %v948
          %v965 = vadd.f32 %v944, %v949
          %v966 = vadd.f32 %v945, %v948
          %v967 = vadd.f32 %v946, %v949
          %v968 = vmax.f32 %v952, 0.0
          %v969 = vmax.f32 %v953, 0.0
          %v970 = vmax.f32 %v954, 0.0
          %v971 = vmax.f32 %v955, 0.0
          %v972 = vmax.f32 %v956, 0.0
          %v973 = vmax.f32 %v957, 0.0
          %v974 = vmax.f32 %v958, 0.0
          %v975 = vmax.f32 %v959, 0.0
          %v976 = vmax.f32 %v960, 0.0
          %v977 = vmax.f32 %v961, 0.0
          %v978 = vmax.f32 %v962, 0.0
          %v979 = vmax.f32 %v963, 0.0
          %v980 = vmax.f32 %v964, 0.0
          %v981 = vmax.f32 %v965, 0.0
          %v982 = vmax.f32 %v966, 0.0
          %v983 = vmax.f32 %v967, 0.0
          %v984 = vpack.c.bf16 %v970, %v968
          %v985 = vpack.c.bf16 %v971, %v969
          %v986 = vpack.c.bf16 %v974, %v972
          %v987 = vpack.c.bf16 %v975, %v973
          %v988 = vpack.c.bf16 %v978, %v976
          %v989 = vpack.c.bf16 %v979, %v977
          %v990 = vpack.c.bf16 %v982, %v980
          %v991 = vpack.c.bf16 %v983, %v981
          %v992 = vld [vmem:[#allocation11] sm:$0xf]
          %v993 = vld [vmem:[#allocation11 + $0x4] sm:$0xf]
          %v994 = vld [vmem:[#allocation11 + $0x8] sm:$0xf]
          %v995 = vld [vmem:[#allocation11 + $0xc] sm:$0xf]
          %v996 = vld [vmem:[#allocation11 + $0x10] sm:$0xf]
          %v997 = vld [vmem:[#allocation11 + $0x14] sm:$0xf]
          %v998 = vld [vmem:[#allocation11 + $0x18] sm:$0xf]
          %v999 = vld [vmem:[#allocation11 + $0x1c] sm:$0xf]
          %v1000 = vld [vmem:[#allocation11 + $0x20] sm:$0xf]
          %v1001 = vld [vmem:[#allocation11 + $0x24] sm:$0xf]
          %v1002 = vld [vmem:[#allocation11 + $0x28] sm:$0xf]
          %v1003 = vld [vmem:[#allocation11 + $0x2c] sm:$0xf]
          %v1004 = vld [vmem:[#allocation11 + $0x30] sm:$0xf]
          %v1005 = vld [vmem:[#allocation11 + $0x34] sm:$0xf]
          %v1006 = vld [vmem:[#allocation11 + $0x38] sm:$0xf]
          %v1007 = vld [vmem:[#allocation11 + $0x3c] sm:$0xf]
          %v1008 = vld [vmem:[#allocation11 + $0x40] sm:$0xf]
          %v1009 = vld [vmem:[#allocation11 + $0x44] sm:$0xf]
          %v1010 = vld [vmem:[#allocation11 + $0x48] sm:$0xf]
          %v1011 = vld [vmem:[#allocation11 + $0x4c] sm:$0xf]
          %v1012 = vld [vmem:[#allocation11 + $0x50] sm:$0xf]
          %v1013 = vld [vmem:[#allocation11 + $0x54] sm:$0xf]
          %v1014 = vld [vmem:[#allocation11 + $0x58] sm:$0xf]
          %v1015 = vld [vmem:[#allocation11 + $0x5c] sm:$0xf]
          %v1016 = vld [vmem:[#allocation11 + $0x60] sm:$0xf]
          %v1017 = vld [vmem:[#allocation11 + $0x64] sm:$0xf]
          %v1018 = vld [vmem:[#allocation11 + $0x68] sm:$0xf]
          %v1019 = vld [vmem:[#allocation11 + $0x6c] sm:$0xf]
          %v1020 = vld [vmem:[#allocation11 + $0x70] sm:$0xf]
          %v1021 = vld [vmem:[#allocation11 + $0x74] sm:$0xf]
          %v1022 = vld [vmem:[#allocation11 + $0x78] sm:$0xf]
          %v1023 = vld [vmem:[#allocation11 + $0x7c] sm:$0xf]
          %v1024 = vld [vmem:[%s5] sm:$0x1]
          %v1026 = vperm.slane %v1024, 0
          %v1060 = vunpack.c.l.b16 %v992
          %v1061 = vunpack.c.l.b16 %v993
          %v1062 = vunpack.c.l.b16 %v994
          %v1063 = vunpack.c.l.b16 %v995
          %v1064 = vunpack.c.l.b16 %v996
          %v1065 = vunpack.c.l.b16 %v997
          %v1066 = vunpack.c.l.b16 %v998
          %v1067 = vunpack.c.l.b16 %v999
          %v1068 = vunpack.c.l.b16 %v1000
          %v1069 = vunpack.c.l.b16 %v1001
          %v1070 = vunpack.c.l.b16 %v1002
          %v1071 = vunpack.c.l.b16 %v1003
          %v1072 = vunpack.c.l.b16 %v1004
          %v1073 = vunpack.c.l.b16 %v1005
          %v1074 = vunpack.c.l.b16 %v1006
          %v1075 = vunpack.c.l.b16 %v1007
          %v1076 = vunpack.c.l.b16 %v1008
          %v1077 = vunpack.c.l.b16 %v1009
          %v1078 = vunpack.c.l.b16 %v1010
          %v1079 = vunpack.c.l.b16 %v1011
          %v1080 = vunpack.c.l.b16 %v1012
          %v1081 = vunpack.c.l.b16 %v1013
          %v1082 = vunpack.c.l.b16 %v1014
          %v1083 = vunpack.c.l.b16 %v1015
          %v1084 = vunpack.c.l.b16 %v1016
          %v1085 = vunpack.c.l.b16 %v1017
          %v1086 = vunpack.c.l.b16 %v1018
          %v1087 = vunpack.c.l.b16 %v1019
          %v1088 = vunpack.c.l.b16 %v1020
          %v1089 = vunpack.c.l.b16 %v1021
          %v1090 = vunpack.c.l.b16 %v1022
          %v1091 = vunpack.c.l.b16 %v1023
          %v1092 = vpack.c.b16 %v1061, %v1060
          %v1093 = vpack.c.b16 %v1063, %v1062
          %v1094 = vpack.c.b16 %v1065, %v1064
          %v1095 = vpack.c.b16 %v1067, %v1066
          %v1096 = vpack.c.b16 %v1069, %v1068
          %v1097 = vpack.c.b16 %v1071, %v1070
          %v1098 = vpack.c.b16 %v1073, %v1072
          %v1099 = vpack.c.b16 %v1075, %v1074
          %v1100 = vpack.c.b16 %v1077, %v1076
          %v1101 = vpack.c.b16 %v1079, %v1078
          %v1102 = vpack.c.b16 %v1081, %v1080
          %v1103 = vpack.c.b16 %v1083, %v1082
          %v1104 = vpack.c.b16 %v1085, %v1084
          %v1105 = vpack.c.b16 %v1087, %v1086
          %v1106 = vpack.c.b16 %v1089, %v1088
          %v1107 = vpack.c.b16 %v1091, %v1090
          %1124 = vmatpush.bf16.msra.mxu0 %v1099
          %1125 = vmatpush.bf16.msra.mxu0 %v1098
          %1126 = vmatpush.bf16.msra.mxu0 %v1097
          %1127 = vmatpush.bf16.msra.mxu0 %v1096
          %1128 = vmatpush.bf16.msra.mxu0 %v1095
          %1129 = vmatpush.bf16.msra.mxu0 %v1094
          %1130 = vmatpush.bf16.msra.mxu0 %v1093
          %1131 = vmatpush.bf16.msra.mxu0 %v1092
          %1132 = vmatmul.bf16.gmra.mxu0 %v984
          %v1133 = vpop.f32.mrf.mxu0
          %v1134 = vadd.f32 %v1026, %v1133
          %v1135 = vpop.f32.mrf.mxu0
          %v1136 = vadd.f32 %v1026, %v1135
          %1137 = vmatmul.bf16.gmra.mxu0 %v986
          %v1138 = vpop.f32.mrf.mxu0
          %v1139 = vadd.f32 %v1026, %v1138
          %v1140 = vpop.f32.mrf.mxu0
          %v1141 = vadd.f32 %v1026, %v1140
          %1142 = vmatmul.bf16.gmra.mxu0 %v988
          %v1143 = vpop.f32.mrf.mxu0
          %v1144 = vadd.f32 %v1026, %v1143
          %v1145 = vpop.f32.mrf.mxu0
          %v1146 = vadd.f32 %v1026, %v1145
          %1147 = vmatmul.bf16.gmra.mxu0 %v990
          %v1148 = vpop.f32.mrf.mxu0
          %v1149 = vadd.f32 %v1026, %v1148
          %v1150 = vpop.f32.mrf.mxu0
          %v1151 = vadd.f32 %v1026, %v1150
          %1152 = vdwg.mxu0
          %1153 = vmatpush.bf16.msra.mxu0 %v1107
          %1154 = vmatpush.bf16.msra.mxu0 %v1106
          %1155 = vmatpush.bf16.msra.mxu0 %v1105
          %1156 = vmatpush.bf16.msra.mxu0 %v1104
          %1157 = vmatpush.bf16.msra.mxu0 %v1103
          %1158 = vmatpush.bf16.msra.mxu0 %v1102
          %1159 = vmatpush.bf16.msra.mxu0 %v1101
          %1160 = vmatpush.bf16.msra.mxu0 %v1100
          %1161 = vmatmul.bf16.gmra.mxu0 %v985
          %v1162 = vpop.f32.mrf.mxu0
          %v1163 = vadd.f32 %v1134, %v1162
          %v1164 = vpop.f32.mrf.mxu0
          %v1165 = vadd.f32 %v1136, %v1164
          %1166 = vmatmul.bf16.gmra.mxu0 %v987
          %v1167 = vpop.f32.mrf.mxu0
          %v1168 = vadd.f32 %v1139, %v1167
          %v1169 = vpop.f32.mrf.mxu0
          %v1170 = vadd.f32 %v1141, %v1169
          %1171 = vmatmul.bf16.gmra.mxu0 %v989
          %v1172 = vpop.f32.mrf.mxu0
          %v1173 = vadd.f32 %v1144, %v1172
          %v1174 = vpop.f32.mrf.mxu0
          %v1175 = vadd.f32 %v1146, %v1174
          %1176 = vmatmul.bf16.gmra.mxu0 %v991
          %v1177 = vpop.f32.mrf.mxu0
          %v1178 = vadd.f32 %v1149, %v1177
          %v1179 = vpop.f32.mrf.mxu0
          %v1180 = vadd.f32 %v1151, %v1179
          %1181 = vdwg.mxu0
          %1182 = vst [vmem:[#allocation12] sm:$0xff] %v1163
          %1183 = vst [vmem:[#allocation12 + $0x8] sm:$0xff] %v1165
          %1184 = vst [vmem:[#allocation12 + $0x10] sm:$0xff] %v1168
          %1185 = vst [vmem:[#allocation12 + $0x18] sm:$0xff] %v1170
          %1186 = vst [vmem:[#allocation12 + $0x20] sm:$0xff] %v1173
          %1187 = vst [vmem:[#allocation12 + $0x28] sm:$0xff] %v1175
          %1188 = vst [vmem:[#allocation12 + $0x30] sm:$0xff] %v1178
          %1189 = vst [vmem:[#allocation12 + $0x38] sm:$0xff] %v1180
        $region72: #{tpu_custom_call.1} parent=43 // pred_fallthru
          _
        // Predicated region
        $region73: #{tpu_custom_call.1} parent=43 // pred_check
          %p1190 = pneg %p172
        $region74: #{tpu_custom_call.1} parent=43 // pred_check_branch
          %1192 = sbr.rel (%p1190) target = $region76
        $region75: #{tpu_custom_call.1} parent=43 // pred_region
          %1194 = vsyncadd [#allocation5], 0
          %s1195 = sshll.u32 [#allocation12], 4
          %s1196 = int_to_ptr.vmem [resolvable:$true] %s1195
          %s1197 = sshll.u32 %s6, 4
          %s1198 = int_to_ptr.hbm [resolvable:$true] %s1197
          %1203 = dma.vmem_to_hbm [thread:$0]  %s1196, 1024, %s1198, [#allocation5], 128, 128, 8
        $region76: #{tpu_custom_call.1} parent=43 // pred_fallthru
          _
        // Predicated region
        $region77: #{tpu_custom_call.1} parent=43 // pred_check
          %p1204 = pneg %p172
        $region78: #{tpu_custom_call.1} parent=43 // pred_check_branch
          %1206 = sbr.rel (%p1204) target = $region80
        $region79: #{tpu_custom_call.1} parent=43 // pred_region
          %1208 = dma.done [#allocation5], 1024
        $region80: #{tpu_custom_call.1} parent=43 // pred_fallthru
          _
      $region44: #{tpu_custom_call.1} parent=5 // pred_fallthru
        _
      %p1209 = scmp.le.s32.totalorder 2, %s18
      // Predicated region
      $region81: #{tpu_custom_call.1} parent=5 // pred_check
        %p1210 = pneg %p1209
      $region82: #{tpu_custom_call.1} parent=5 // pred_check_branch
        %1212 = sbr.rel (%p1210) target = $region84
      $region83: #{tpu_custom_call.1} parent=5 // pred_region
        %s1213 = ssub.s32 %s18, 2
      $region84: #{tpu_custom_call.1} parent=5 // pred_fallthru
        _
    $region6: #{tpu_custom_call.1} parent=1 // loop_footer
      %s22 = sadd.s32 1, %s18
    $region7: #{tpu_custom_call.1} parent=1 // loop_footer_branch
      %17 = sbr.rel target = $region3
    $region8: #{tpu_custom_call.1} parent=1 // loop_exit
      _
    %1214 = vsyncpa [#allocation4], 1
    %s1215 = scalar_lea.sflag [#allocation4], 1
    %1216 = vsyncpa %s1215, 1
    %1217 = vsyncpa [#allocation7], 1
    %s1218 = scalar_lea.sflag [#allocation7], 1
    %1219 = vsyncpa %s1218, 1
    %1220 = vsyncpa [#allocation10], 1
    %1221 = vsyncpa [#allocation5], 1
    %s1222 = scalar_lea.sflag [#allocation5], 1
    %1223 = vsyncpa %s1222, 1

</llo_original>
